<compile_context>
chip_gen: v7x
topology: tpu7x:2x2x1
jax: 0.10.0
libtpu: 0.0.40
codegen_flags: <defaults>
</compile_context>

<pallas_src>
import jax
import jax.numpy as jnp
from jax import lax
from jax.experimental import pallas as pl
from jax.experimental.pallas import tpu as pltpu

SQRT_HALF = 0.7071067811865476


# ------------------------------- fused kernel --------------------------------
def _mlp_kernel(x_ref, w1_ref, b1_ref, w2_ref, b2_ref, o_ref):
    # x_ref: (B*N, C_in) tokens, row-major (batch merged into the token axis).
    x = x_ref[...]

    # fc1: x @ w1^T   (w1 is PyTorch-layout (H, C_in); contraction on the
    # weight's last dim, so no transpose is materialized anywhere).
    h = lax.dot_general(x, w1_ref[...], (((1,), (1,)), ((), ())),
                        preferred_element_type=jnp.float32)          # (B*N, H) f32
    h = h + b1_ref[...]                                               # (1, H) broadcast

    # Exact GELU (nn.GELU default = erf form), computed in f32.
    h = 0.5 * h * (1.0 + lax.erf(h * SQRT_HALF))

    # fc2: h @ w2^T
    y = lax.dot_general(h, w2_ref[...], (((1,), (1,)), ((), ())),
                        preferred_element_type=jnp.float32)          # (B*N, C_out)
    y = y + b2_ref[...]

    # Dropout p = 0.0 -> identity (no-op).
    o_ref[...] = y.astype(o_ref.dtype)


def mlp_pallas(x, w1, b1, w2, b2):
    """Mlp forward.

    x : (B, N, C_in) tokens.
    w1: (hidden, C_in), b1: (hidden,)      -- fc1, PyTorch nn.Linear layout.
    w2: (C_out, hidden), b2: (C_out,)      -- fc2.
    Returns (B, N, C_out).
    """
    B, N, C_in = x.shape
    Hd = w1.shape[0]
    C_out = w2.shape[0]
    BN = B * N

    # Contiguous reshape only (no copy) -- batch merged into the token axis.
    x2 = x.reshape(BN, C_in)

    vmem = pl.BlockSpec(memory_space=pltpu.MemorySpace.VMEM)
    out2 = pl.pallas_call(
        _mlp_kernel,
        out_shape=jax.ShapeDtypeStruct((BN, C_out), x.dtype),
        in_specs=[vmem, vmem, vmem, vmem, vmem],   # whole arrays, VMEM-resident
        out_specs=vmem,
    )(x2, w1, b1.reshape(1, Hd), w2, b2.reshape(1, C_out))

    return out2.reshape(B, N, C_out)


# ----------------------------------- main -------------------------------------
if __name__ == "__main__":
    # Shapes implied by the refineblock usage: 16x16 feature map -> N = 256
    # tokens, embed_dim = 8, mlp_ratio = 4 -> hidden = 32, batch = 2.
    B, N, C_IN = 2, 256, 8
    HIDDEN = 4 * C_IN
    C_OUT = C_IN

    key = jax.random.PRNGKey(0)
    kx, k1, k2, k3, k4 = jax.random.split(key, 5)
    x = jax.random.normal(kx, (B, N, C_IN), jnp.float32)
    w1 = 0.1 * jax.random.normal(k1, (HIDDEN, C_IN), jnp.float32)
    b1 = 0.1 * jax.random.normal(k2, (HIDDEN,), jnp.float32)
    w2 = 0.1 * jax.random.normal(k3, (C_OUT, HIDDEN), jnp.float32)
    b2 = 0.1 * jax.random.normal(k4, (C_OUT,), jnp.float32)

    fwd = jax.jit(mlp_pallas)
    out = fwd(x, w1, b1, w2, b2)
    jax.block_until_ready(out)
    assert out.shape == (B, N, C_OUT)

    # Pure-JAX reference (Dropout with p=0 is identity).
    ref = jax.nn.gelu(x @ w1.T + b1, approximate=False) @ w2.T + b2
    assert jnp.allclose(out, ref, atol=1e-5, rtol=1e-5), float(jnp.max(jnp.abs(out - ref)))

    print("KERNEL_OK")
</pallas_src>

<mosaic_0001>
module attributes {stable_mosaic.version = 11 : i64} {
  func.func @_mlp_kernel(%arg0: memref<512x8xf32, #tpu.memory_space<vmem>>, %arg1: memref<32x8xf32, #tpu.memory_space<vmem>>, %arg2: memref<1x32xf32, #tpu.memory_space<vmem>>, %arg3: memref<8x32xf32, #tpu.memory_space<vmem>>, %arg4: memref<1x8xf32, #tpu.memory_space<vmem>>, %arg5: memref<512x8xf32, #tpu.memory_space<vmem>>) attributes {dimension_semantics = [], scalar_prefetch = 0 : i64, scratch_operands = 0 : i64, tpu.core_type = #tpu.core_type<tc>} {
    %c0 = arith.constant 0 : index
    %c0_0 = arith.constant 0 : index
    %0 = vector.load %arg0[%c0, %c0_0] : memref<512x8xf32, #tpu.memory_space<vmem>>, vector<512x8xf32>
    %c0_1 = arith.constant 0 : index
    %c0_2 = arith.constant 0 : index
    %1 = vector.load %arg1[%c0_1, %c0_2] : memref<32x8xf32, #tpu.memory_space<vmem>>, vector<32x8xf32>
    %cst = arith.constant dense<0.000000e+00> : vector<512x32xf32>
    %2 = tpu.matmul %0, %1, %cst {dimension_numbers = #tpu.dot_dimension_numbers<[1], [1], [0], [0], [0, 0, 1, 0], [], []>} : vector<512x8xf32>, vector<32x8xf32>, vector<512x32xf32> -> vector<512x32xf32>
    %c0_3 = arith.constant 0 : index
    %c0_4 = arith.constant 0 : index
    %3 = vector.load %arg2[%c0_3, %c0_4] : memref<1x32xf32, #tpu.memory_space<vmem>>, vector<1x32xf32>
    %4 = vector.broadcast %3 : vector<1x32xf32> to vector<512x32xf32>
    %5 = arith.addf %2, %4 : vector<512x32xf32>
    %cst_5 = arith.constant 5.000000e-01 : f32
    %6 = vector.broadcast %cst_5 : f32 to vector<512x32xf32>
    %7 = arith.mulf %6, %5 : vector<512x32xf32>
    %cst_6 = arith.constant 0.707106769 : f32
    %8 = vector.broadcast %cst_6 : f32 to vector<512x32xf32>
    %9 = arith.mulf %5, %8 : vector<512x32xf32>
    %10 = math.erf %9 : vector<512x32xf32>
    %cst_7 = arith.constant 1.000000e+00 : f32
    %11 = vector.broadcast %cst_7 : f32 to vector<512x32xf32>
    %12 = arith.addf %11, %10 : vector<512x32xf32>
    %13 = arith.mulf %7, %12 : vector<512x32xf32>
    %c0_8 = arith.constant 0 : index
    %c0_9 = arith.constant 0 : index
    %14 = vector.load %arg3[%c0_8, %c0_9] : memref<8x32xf32, #tpu.memory_space<vmem>>, vector<8x32xf32>
    %cst_10 = arith.constant dense<0.000000e+00> : vector<512x8xf32>
    %15 = tpu.matmul %13, %14, %cst_10 {dimension_numbers = #tpu.dot_dimension_numbers<[1], [1], [0], [0], [0, 0, 1, 0], [], []>} : vector<512x32xf32>, vector<8x32xf32>, vector<512x8xf32> -> vector<512x8xf32>
    %c0_11 = arith.constant 0 : index
    %c0_12 = arith.constant 0 : index
    %16 = vector.load %arg4[%c0_11, %c0_12] : memref<1x8xf32, #tpu.memory_space<vmem>>, vector<1x8xf32>
    %17 = vector.broadcast %16 : vector<1x8xf32> to vector<512x8xf32>
    %18 = arith.addf %15, %17 : vector<512x8xf32>
    %c0_13 = arith.constant 0 : index
    %c0_14 = arith.constant 0 : index
    %19 = vector.load %arg5[%c0_13, %c0_14] : memref<512x8xf32, #tpu.memory_space<vmem>>, vector<512x8xf32>
    tpu.vector_store %arg5[%c0_13, %c0_14], %18 {strides = array<i32>} : memref<512x8xf32, #tpu.memory_space<vmem>>, vector<512x8xf32>,
    return
  }
}

</mosaic_0001>

<llo_original>
// kernel: mlp_pallas.1
$region0: #{mlp_pallas.1}
  #allocation0 [shape = 'u32[]', space=smem, size = 0x4, offset = 0x4, fixed_abs, tag = 'smem constant byte address 0x4 - core index']
  #allocation1 [shape = 'u32[144,128]{1,0:T(1,128)}', space=vmem, size = 0x12000, scoped, tag = 'internal scratch']
  %s0 = inlined_call_operand.vmem [shape: f32[512,8], index: 0, kind: input, shape index: {}]
  %s1 = inlined_call_operand.vmem [shape: f32[32,8], index: 1, kind: input, shape index: {}]
  %s2 = inlined_call_operand.vmem [shape: f32[1,32], index: 2, kind: input, shape index: {}]
  %s3 = inlined_call_operand.vmem [shape: f32[8,32], index: 3, kind: input, shape index: {}]
  %s4 = inlined_call_operand.vmem [shape: f32[1,8], index: 4, kind: input, shape index: {}]
  %s5 = inlined_call_operand.vmem [shape: f32[512,8], index: 5, kind: output, shape index: {}]
  %s6 = sld [smem:[#allocation0]]
  $region30: #{mlp_pallas.1} parent=0
    _
  %s8 = ssub.s32 1, %s6
  %s9 = scalar_select 0, %s8, %s6
  // Predicated region
  $region2: #{mlp_pallas.1} parent=0 // pred_check
    _
  $region3: #{mlp_pallas.1} parent=0 // pred_check_branch
    %11 = sbr.rel (0) target = $region5
  $region4: #{mlp_pallas.1} parent=0 // pred_region
    _
  $region5: #{mlp_pallas.1} parent=0 // pred_fallthru
    _
  // Predicated region
  $region6: #{mlp_pallas.1} parent=0 // pred_check
    _
  $region7: #{mlp_pallas.1} parent=0 // pred_check_branch
    %13 = sbr.rel (0) target = $region9
  $region8: #{mlp_pallas.1} parent=0 // pred_region
    _
  $region9: #{mlp_pallas.1} parent=0 // pred_fallthru
    _
  // Predicated region
  $region10: #{mlp_pallas.1} parent=0 // pred_check
    _
  $region11: #{mlp_pallas.1} parent=0 // pred_check_branch
    %15 = sbr.rel (0) target = $region13
  $region12: #{mlp_pallas.1} parent=0 // pred_region
    _
  $region13: #{mlp_pallas.1} parent=0 // pred_fallthru
    _
  // Predicated region
  $region14: #{mlp_pallas.1} parent=0 // pred_check
    _
  $region15: #{mlp_pallas.1} parent=0 // pred_check_branch
    %17 = sbr.rel (0) target = $region17
  $region16: #{mlp_pallas.1} parent=0 // pred_region
    _
  $region17: #{mlp_pallas.1} parent=0 // pred_fallthru
    _
  // Predicated region
  $region18: #{mlp_pallas.1} parent=0 // pred_check
    _
  $region19: #{mlp_pallas.1} parent=0 // pred_check_branch
    %19 = sbr.rel (0) target = $region21
  $region20: #{mlp_pallas.1} parent=0 // pred_region
    _
  $region21: #{mlp_pallas.1} parent=0 // pred_fallthru
    _
  %v20 = vld [vmem:[%s0] sm:$0xff]
  %v21 = vld [vmem:[%s0 + $0x8] sm:$0xff]
  %v22 = vld [vmem:[%s0 + $0x10] sm:$0xff]
  %v23 = vld [vmem:[%s0 + $0x18] sm:$0xff]
  %v24 = vld [vmem:[%s0 + $0x20] sm:$0xff]
  %v25 = vld [vmem:[%s0 + $0x28] sm:$0xff]
  %v26 = vld [vmem:[%s0 + $0x30] sm:$0xff]
  %v27 = vld [vmem:[%s0 + $0x38] sm:$0xff]
  %v28 = vld [vmem:[%s0 + $0x40] sm:$0xff]
  %v29 = vld [vmem:[%s0 + $0x48] sm:$0xff]
  %v30 = vld [vmem:[%s0 + $0x50] sm:$0xff]
  %v31 = vld [vmem:[%s0 + $0x58] sm:$0xff]
  %v32 = vld [vmem:[%s0 + $0x60] sm:$0xff]
  %v33 = vld [vmem:[%s0 + $0x68] sm:$0xff]
  %v34 = vld [vmem:[%s0 + $0x70] sm:$0xff]
  %v35 = vld [vmem:[%s0 + $0x78] sm:$0xff]
  %v36 = vld [vmem:[%s0 + $0x80] sm:$0xff]
  %v37 = vld [vmem:[%s0 + $0x88] sm:$0xff]
  %v38 = vld [vmem:[%s0 + $0x90] sm:$0xff]
  %v39 = vld [vmem:[%s0 + $0x98] sm:$0xff]
  %v40 = vld [vmem:[%s0 + $0xa0] sm:$0xff]
  %v41 = vld [vmem:[%s0 + $0xa8] sm:$0xff]
  %v42 = vld [vmem:[%s0 + $0xb0] sm:$0xff]
  %v43 = vld [vmem:[%s0 + $0xb8] sm:$0xff]
  %v44 = vld [vmem:[%s0 + $0xc0] sm:$0xff]
  %v45 = vld [vmem:[%s0 + $0xc8] sm:$0xff]
  %v46 = vld [vmem:[%s0 + $0xd0] sm:$0xff]
  %v47 = vld [vmem:[%s0 + $0xd8] sm:$0xff]
  %v48 = vld [vmem:[%s0 + $0xe0] sm:$0xff]
  %v49 = vld [vmem:[%s0 + $0xe8] sm:$0xff]
  %v50 = vld [vmem:[%s0 + $0xf0] sm:$0xff]
  %v51 = vld [vmem:[%s0 + $0xf8] sm:$0xff]
  %v52 = vld [vmem:[%s0 + $0x100] sm:$0xff]
  %v53 = vld [vmem:[%s0 + $0x108] sm:$0xff]
  %v54 = vld [vmem:[%s0 + $0x110] sm:$0xff]
  %v55 = vld [vmem:[%s0 + $0x118] sm:$0xff]
  %v56 = vld [vmem:[%s0 + $0x120] sm:$0xff]
  %v57 = vld [vmem:[%s0 + $0x128] sm:$0xff]
  %v58 = vld [vmem:[%s0 + $0x130] sm:$0xff]
  %v59 = vld [vmem:[%s0 + $0x138] sm:$0xff]
  %v60 = vld [vmem:[%s0 + $0x140] sm:$0xff]
  %v61 = vld [vmem:[%s0 + $0x148] sm:$0xff]
  %v62 = vld [vmem:[%s0 + $0x150] sm:$0xff]
  %v63 = vld [vmem:[%s0 + $0x158] sm:$0xff]
  %v64 = vld [vmem:[%s0 + $0x160] sm:$0xff]
  %v65 = vld [vmem:[%s0 + $0x168] sm:$0xff]
  %v66 = vld [vmem:[%s0 + $0x170] sm:$0xff]
  %v67 = vld [vmem:[%s0 + $0x178] sm:$0xff]
  %v68 = vld [vmem:[%s0 + $0x180] sm:$0xff]
  %v69 = vld [vmem:[%s0 + $0x188] sm:$0xff]
  %v70 = vld [vmem:[%s0 + $0x190] sm:$0xff]
  %v71 = vld [vmem:[%s0 + $0x198] sm:$0xff]
  %v72 = vld [vmem:[%s0 + $0x1a0] sm:$0xff]
  %v73 = vld [vmem:[%s0 + $0x1a8] sm:$0xff]
  %v74 = vld [vmem:[%s0 + $0x1b0] sm:$0xff]
  %v75 = vld [vmem:[%s0 + $0x1b8] sm:$0xff]
  %v76 = vld [vmem:[%s0 + $0x1c0] sm:$0xff]
  %v77 = vld [vmem:[%s0 + $0x1c8] sm:$0xff]
  %v78 = vld [vmem:[%s0 + $0x1d0] sm:$0xff]
  %v79 = vld [vmem:[%s0 + $0x1d8] sm:$0xff]
  %v80 = vld [vmem:[%s0 + $0x1e0] sm:$0xff]
  %v81 = vld [vmem:[%s0 + $0x1e8] sm:$0xff]
  %v82 = vld [vmem:[%s0 + $0x1f0] sm:$0xff]
  %v83 = vld [vmem:[%s0 + $0x1f8] sm:$0xff]
  %v84 = vld [vmem:[%s1] sm:$0xff]
  %v85 = vld [vmem:[%s1 + $0x8] sm:$0xff]
  %v86 = vld [vmem:[%s1 + $0x10] sm:$0xff]
  %v87 = vld [vmem:[%s1 + $0x18] sm:$0xff]
  %v88 = vld [vmem:[%s2] sm:$0x1]
  %v90 = vlaneseq
  %v91 = vshrl.u32 %v90, 7
  %v92 = vsub.s32 0, %v91
  %v93 = vrot.slane %v88, %v92
  %vm95 = vcmask 64512
  %v97 = vsel %vm95, %v20, 0
  %v100 = vsel %vm95, %v21, 0
  %v103 = vsel %vm95, %v22, 0
  %v106 = vsel %vm95, %v23, 0
  %v109 = vsel %vm95, %v24, 0
  %v112 = vsel %vm95, %v25, 0
  %v115 = vsel %vm95, %v26, 0
  %v118 = vsel %vm95, %v27, 0
  %v121 = vsel %vm95, %v28, 0
  %v124 = vsel %vm95, %v29, 0
  %v127 = vsel %vm95, %v30, 0
  %v130 = vsel %vm95, %v31, 0
  %v133 = vsel %vm95, %v32, 0
  %v136 = vsel %vm95, %v33, 0
  %v139 = vsel %vm95, %v34, 0
  %v142 = vsel %vm95, %v35, 0
  %v145 = vsel %vm95, %v36, 0
  %v148 = vsel %vm95, %v37, 0
  %v151 = vsel %vm95, %v38, 0
  %v154 = vsel %vm95, %v39, 0
  %v157 = vsel %vm95, %v40, 0
  %v160 = vsel %vm95, %v41, 0
  %v163 = vsel %vm95, %v42, 0
  %v166 = vsel %vm95, %v43, 0
  %v169 = vsel %vm95, %v44, 0
  %v172 = vsel %vm95, %v45, 0
  %v175 = vsel %vm95, %v46, 0
  %v178 = vsel %vm95, %v47, 0
  %v181 = vsel %vm95, %v48, 0
  %v184 = vsel %vm95, %v49, 0
  %v187 = vsel %vm95, %v50, 0
  %v190 = vsel %vm95, %v51, 0
  %v193 = vsel %vm95, %v52, 0
  %v196 = vsel %vm95, %v53, 0
  %v199 = vsel %vm95, %v54, 0
  %v202 = vsel %vm95, %v55, 0
  %v205 = vsel %vm95, %v56, 0
  %v208 = vsel %vm95, %v57, 0
  %v211 = vsel %vm95, %v58, 0
  %v214 = vsel %vm95, %v59, 0
  %v217 = vsel %vm95, %v60, 0
  %v220 = vsel %vm95, %v61, 0
  %v223 = vsel %vm95, %v62, 0
  %v226 = vsel %vm95, %v63, 0
  %v229 = vsel %vm95, %v64, 0
  %v232 = vsel %vm95, %v65, 0
  %v235 = vsel %vm95, %v66, 0
  %v238 = vsel %vm95, %v67, 0
  %v241 = vsel %vm95, %v68, 0
  %v244 = vsel %vm95, %v69, 0
  %v247 = vsel %vm95, %v70, 0
  %v250 = vsel %vm95, %v71, 0
  %v253 = vsel %vm95, %v72, 0
  %v256 = vsel %vm95, %v73, 0
  %v259 = vsel %vm95, %v74, 0
  %v262 = vsel %vm95, %v75, 0
  %v265 = vsel %vm95, %v76, 0
  %v268 = vsel %vm95, %v77, 0
  %v271 = vsel %vm95, %v78, 0
  %v274 = vsel %vm95, %v79, 0
  %v277 = vsel %vm95, %v80, 0
  %v280 = vsel %vm95, %v81, 0
  %v283 = vsel %vm95, %v82, 0
  %v286 = vsel %vm95, %v83, 0
  %v289 = vsel %vm95, %v84, 0
  %v292 = vsel %vm95, %v85, 0
  %v295 = vsel %vm95, %v86, 0
  %v298 = vsel %vm95, %v87, 0
  %300 = vmatprep.subr.mxu0 0.0
  %301 = vmatpush1.xpose.msra.mxu0 %v289
  %302 = vmatprep.subr.mxu0 0.0
  %303 = vmatpush1.xpose.msra.mxu0 %v292
  %304 = vmatprep.subr.mxu0 0.0
  %305 = vmatpush1.xpose.msra.mxu0 %v295
  %306 = vmatprep.subr.mxu0 0.0
  %307 = vmatpush1.xpose.msra.mxu0 %v298
  %308 = vmatprep.subr.mxu0 0.0
  %309 = vmatpush1.xpose.msra.mxu0 0.0
  %310 = vmatprep.subr.mxu0 0.0
  %311 = vmatpush1.xpose.msra.mxu0 0.0
  %312 = vmatprep.subr.mxu0 0.0
  %313 = vmatpush1.xpose.msra.mxu0 0.0
  %314 = vmatprep.subr.mxu0 0.0
  %315 = vmatpush1.xpose.msra.mxu0 0.0
  %316 = vmatprep.subr.mxu0 0.0
  %317 = vmatpush1.xpose.msra.mxu0 0.0
  %318 = vmatprep.subr.mxu0 0.0
  %319 = vmatpush1.xpose.msra.mxu0 0.0
  %320 = vmatprep.subr.mxu0 0.0
  %321 = vmatpush1.xpose.msra.mxu0 0.0
  %322 = vmatprep.subr.mxu0 0.0
  %323 = vmatpush1.xpose.msra.mxu0 0.0
  %324 = vmatprep.subr.mxu0 0.0
  %325 = vmatpush1.xpose.msra.mxu0 0.0
  %326 = vmatprep.subr.mxu0 0.0
  %327 = vmatpush1.xpose.msra.mxu0 0.0
  %328 = vmatprep.subr.mxu0 0.0
  %329 = vmatpush1.xpose.msra.mxu0 0.0
  %330 = vmatprep.subr.mxu0 0.0
  %331 = vmatpush1.xpose.msra.mxu0 0.0
  %332 = vmatprep.subr.mxu0 0.0
  %333 = vmatpush1.xpose.msra.mxu0 0.0
  %334 = vmatprep.subr.mxu0 0.0
  %335 = vmatpush1.xpose.msra.mxu0 0.0
  %336 = vmatprep.subr.mxu0 0.0
  %337 = vmatpush1.xpose.msra.mxu0 0.0
  %338 = vmatprep.subr.mxu0 0.0
  %339 = vmatpush1.xpose.msra.mxu0 0.0
  %340 = vmatprep.subr.mxu0 0.0
  %341 = vmatpush1.xpose.msra.mxu0 0.0
  %342 = vmatprep.subr.mxu0 0.0
  %343 = vmatpush1.xpose.msra.mxu0 0.0
  %344 = vmatprep.subr.mxu0 0.0
  %345 = vmatpush1.xpose.msra.mxu0 0.0
  %346 = vmatprep.subr.mxu0 0.0
  %347 = vmatpush1.xpose.msra.mxu0 0.0
  %348 = vmatprep.subr.mxu0 0.0
  %349 = vmatpush1.xpose.msra.mxu0 0.0
  %350 = vmatprep.subr.mxu0 0.0
  %351 = vmatpush1.xpose.msra.mxu0 0.0
  %352 = vmatprep.subr.mxu0 0.0
  %353 = vmatpush1.xpose.msra.mxu0 0.0
  %354 = vmatprep.subr.mxu0 0.0
  %355 = vmatpush1.xpose.msra.mxu0 0.0
  %356 = vmatprep.subr.mxu0 0.0
  %357 = vmatpush1.xpose.msra.mxu0 0.0
  %358 = vmatprep.subr.mxu0 0.0
  %359 = vmatpush1.xpose.msra.mxu0 0.0
  %360 = vmatprep.subr.mxu0 0.0
  %361 = vmatpush1.xpose.msra.mxu0 0.0
  %362 = vmatprep.subr.mxu0 0.0
  %363 = vmatpush1.xpose.msra.mxu0 0.0
  %364 = vmatprep.mubr.f32.mxu0 0.0
  %365 = vmatmul.mubr.f32.gmra.mrb[0].mxu0 %v97
  %v366 = vpop.f32.mrb[0].mxu0
  %v367 = vadd.f32 %v93, %v366
  %v368 = vpop.f32.mrb[0].mxu0
  %369 = vmatprep.mubr.f32.mxu0 0.0
  %370 = vmatmul.mubr.f32.gmra.mrb[0].mxu0 %v100
  %v371 = vpop.f32.mrb[0].mxu0
  %v372 = vadd.f32 %v93, %v371
  %v373 = vpop.f32.mrb[0].mxu0
  %374 = vmatprep.mubr.f32.mxu0 0.0
  %375 = vmatmul.mubr.f32.gmra.mrb[0].mxu0 %v103
  %v376 = vpop.f32.mrb[0].mxu0
  %v377 = vadd.f32 %v93, %v376
  %v378 = vpop.f32.mrb[0].mxu0
  %379 = vmatprep.mubr.f32.mxu0 0.0
  %380 = vmatmul.mubr.f32.gmra.mrb[0].mxu0 %v106
  %v381 = vpop.f32.mrb[0].mxu0
  %v382 = vadd.f32 %v93, %v381
  %v383 = vpop.f32.mrb[0].mxu0
  %384 = vmatprep.mubr.f32.mxu0 0.0
  %385 = vmatmul.mubr.f32.gmra.mrb[0].mxu0 %v109
  %v386 = vpop.f32.mrb[0].mxu0
  %v387 = vadd.f32 %v93, %v386
  %v388 = vpop.f32.mrb[0].mxu0
  %389 = vmatprep.mubr.f32.mxu0 0.0
  %390 = vmatmul.mubr.f32.gmra.mrb[0].mxu0 %v112
  %v391 = vpop.f32.mrb[0].mxu0
  %v392 = vadd.f32 %v93, %v391
  %v393 = vpop.f32.mrb[0].mxu0
  %394 = vmatprep.mubr.f32.mxu0 0.0
  %395 = vmatmul.mubr.f32.gmra.mrb[0].mxu0 %v115
  %v396 = vpop.f32.mrb[0].mxu0
  %v397 = vadd.f32 %v93, %v396
  %v398 = vpop.f32.mrb[0].mxu0
  %399 = vmatprep.mubr.f32.mxu0 0.0
  %400 = vmatmul.mubr.f32.gmra.mrb[0].mxu0 %v118
  %v401 = vpop.f32.mrb[0].mxu0
  %v402 = vadd.f32 %v93, %v401
  %v403 = vpop.f32.mrb[0].mxu0
  %404 = vmatprep.mubr.f32.mxu0 0.0
  %405 = vmatmul.mubr.f32.gmra.mrb[0].mxu0 %v121
  %v406 = vpop.f32.mrb[0].mxu0
  %v407 = vadd.f32 %v93, %v406
  %v408 = vpop.f32.mrb[0].mxu0
  %409 = vmatprep.mubr.f32.mxu0 0.0
  %410 = vmatmul.mubr.f32.gmra.mrb[0].mxu0 %v124
  %v411 = vpop.f32.mrb[0].mxu0
  %v412 = vadd.f32 %v93, %v411
  %v413 = vpop.f32.mrb[0].mxu0
  %414 = vmatprep.mubr.f32.mxu0 0.0
  %415 = vmatmul.mubr.f32.gmra.mrb[0].mxu0 %v127
  %v416 = vpop.f32.mrb[0].mxu0
  %v417 = vadd.f32 %v93, %v416
  %v418 = vpop.f32.mrb[0].mxu0
  %419 = vmatprep.mubr.f32.mxu0 0.0
  %420 = vmatmul.mubr.f32.gmra.mrb[0].mxu0 %v130
  %v421 = vpop.f32.mrb[0].mxu0
  %v422 = vadd.f32 %v93, %v421
  %v423 = vpop.f32.mrb[0].mxu0
  %424 = vmatprep.mubr.f32.mxu0 0.0
  %425 = vmatmul.mubr.f32.gmra.mrb[0].mxu0 %v133
  %v426 = vpop.f32.mrb[0].mxu0
  %v427 = vadd.f32 %v93, %v426
  %v428 = vpop.f32.mrb[0].mxu0
  %429 = vmatprep.mubr.f32.mxu0 0.0
  %430 = vmatmul.mubr.f32.gmra.mrb[0].mxu0 %v136
  %v431 = vpop.f32.mrb[0].mxu0
  %v432 = vadd.f32 %v93, %v431
  %v433 = vpop.f32.mrb[0].mxu0
  %434 = vmatprep.mubr.f32.mxu0 0.0
  %435 = vmatmul.mubr.f32.gmra.mrb[0].mxu0 %v139
  %v436 = vpop.f32.mrb[0].mxu0
  %v437 = vadd.f32 %v93, %v436
  %v438 = vpop.f32.mrb[0].mxu0
  %439 = vmatprep.mubr.f32.mxu0 0.0
  %440 = vmatmul.mubr.f32.gmra.mrb[0].mxu0 %v142
  %v441 = vpop.f32.mrb[0].mxu0
  %v442 = vadd.f32 %v93, %v441
  %v443 = vpop.f32.mrb[0].mxu0
  %444 = vmatprep.mubr.f32.mxu0 0.0
  %445 = vmatmul.mubr.f32.gmra.mrb[0].mxu0 %v145
  %v446 = vpop.f32.mrb[0].mxu0
  %v447 = vadd.f32 %v93, %v446
  %v448 = vpop.f32.mrb[0].mxu0
  %449 = vmatprep.mubr.f32.mxu0 0.0
  %450 = vmatmul.mubr.f32.gmra.mrb[0].mxu0 %v148
  %v451 = vpop.f32.mrb[0].mxu0
  %v452 = vadd.f32 %v93, %v451
  %v453 = vpop.f32.mrb[0].mxu0
  %454 = vmatprep.mubr.f32.mxu0 0.0
  %455 = vmatmul.mubr.f32.gmra.mrb[0].mxu0 %v151
  %v456 = vpop.f32.mrb[0].mxu0
  %v457 = vadd.f32 %v93, %v456
  %v458 = vpop.f32.mrb[0].mxu0
  %459 = vmatprep.mubr.f32.mxu0 0.0
  %460 = vmatmul.mubr.f32.gmra.mrb[0].mxu0 %v154
  %v461 = vpop.f32.mrb[0].mxu0
  %v462 = vadd.f32 %v93, %v461
  %v463 = vpop.f32.mrb[0].mxu0
  %464 = vmatprep.mubr.f32.mxu0 0.0
  %465 = vmatmul.mubr.f32.gmra.mrb[0].mxu0 %v157
  %v466 = vpop.f32.mrb[0].mxu0
  %v467 = vadd.f32 %v93, %v466
  %v468 = vpop.f32.mrb[0].mxu0
  %469 = vmatprep.mubr.f32.mxu0 0.0
  %470 = vmatmul.mubr.f32.gmra.mrb[0].mxu0 %v160
  %v471 = vpop.f32.mrb[0].mxu0
  %v472 = vadd.f32 %v93, %v471
  %v473 = vpop.f32.mrb[0].mxu0
  %474 = vmatprep.mubr.f32.mxu0 0.0
  %475 = vmatmul.mubr.f32.gmra.mrb[0].mxu0 %v163
  %v476 = vpop.f32.mrb[0].mxu0
  %v477 = vadd.f32 %v93, %v476
  %v478 = vpop.f32.mrb[0].mxu0
  %479 = vmatprep.mubr.f32.mxu0 0.0
  %480 = vmatmul.mubr.f32.gmra.mrb[0].mxu0 %v166
  %v481 = vpop.f32.mrb[0].mxu0
  %v482 = vadd.f32 %v93, %v481
  %v483 = vpop.f32.mrb[0].mxu0
  %484 = vmatprep.mubr.f32.mxu0 0.0
  %485 = vmatmul.mubr.f32.gmra.mrb[0].mxu0 %v169
  %v486 = vpop.f32.mrb[0].mxu0
  %v487 = vadd.f32 %v93, %v486
  %v488 = vpop.f32.mrb[0].mxu0
  %489 = vmatprep.mubr.f32.mxu0 0.0
  %490 = vmatmul.mubr.f32.gmra.mrb[0].mxu0 %v172
  %v491 = vpop.f32.mrb[0].mxu0
  %v492 = vadd.f32 %v93, %v491
  %v493 = vpop.f32.mrb[0].mxu0
  %494 = vmatprep.mubr.f32.mxu0 0.0
  %495 = vmatmul.mubr.f32.gmra.mrb[0].mxu0 %v175
  %v496 = vpop.f32.mrb[0].mxu0
  %v497 = vadd.f32 %v93, %v496
  %v498 = vpop.f32.mrb[0].mxu0
  %499 = vmatprep.mubr.f32.mxu0 0.0
  %500 = vmatmul.mubr.f32.gmra.mrb[0].mxu0 %v178
  %v501 = vpop.f32.mrb[0].mxu0
  %v502 = vadd.f32 %v93, %v501
  %v503 = vpop.f32.mrb[0].mxu0
  %504 = vmatprep.mubr.f32.mxu0 0.0
  %505 = vmatmul.mubr.f32.gmra.mrb[0].mxu0 %v181
  %v506 = vpop.f32.mrb[0].mxu0
  %v507 = vadd.f32 %v93, %v506
  %v508 = vpop.f32.mrb[0].mxu0
  %509 = vmatprep.mubr.f32.mxu0 0.0
  %510 = vmatmul.mubr.f32.gmra.mrb[0].mxu0 %v184
  %v511 = vpop.f32.mrb[0].mxu0
  %v512 = vadd.f32 %v93, %v511
  %v513 = vpop.f32.mrb[0].mxu0
  %514 = vmatprep.mubr.f32.mxu0 0.0
  %515 = vmatmul.mubr.f32.gmra.mrb[0].mxu0 %v187
  %v516 = vpop.f32.mrb[0].mxu0
  %v517 = vadd.f32 %v93, %v516
  %v518 = vpop.f32.mrb[0].mxu0
  %519 = vmatprep.mubr.f32.mxu0 0.0
  %520 = vmatmul.mubr.f32.gmra.mrb[0].mxu0 %v190
  %v521 = vpop.f32.mrb[0].mxu0
  %v522 = vadd.f32 %v93, %v521
  %v523 = vpop.f32.mrb[0].mxu0
  %524 = vmatprep.mubr.f32.mxu0 0.0
  %525 = vmatmul.mubr.f32.gmra.mrb[0].mxu0 %v193
  %v526 = vpop.f32.mrb[0].mxu0
  %v527 = vadd.f32 %v93, %v526
  %v528 = vpop.f32.mrb[0].mxu0
  %529 = vmatprep.mubr.f32.mxu0 0.0
  %530 = vmatmul.mubr.f32.gmra.mrb[0].mxu0 %v196
  %v531 = vpop.f32.mrb[0].mxu0
  %v532 = vadd.f32 %v93, %v531
  %v533 = vpop.f32.mrb[0].mxu0
  %534 = vmatprep.mubr.f32.mxu0 0.0
  %535 = vmatmul.mubr.f32.gmra.mrb[0].mxu0 %v199
  %v536 = vpop.f32.mrb[0].mxu0
  %v537 = vadd.f32 %v93, %v536
  %v538 = vpop.f32.mrb[0].mxu0
  %539 = vmatprep.mubr.f32.mxu0 0.0
  %540 = vmatmul.mubr.f32.gmra.mrb[0].mxu0 %v202
  %v541 = vpop.f32.mrb[0].mxu0
  %v542 = vadd.f32 %v93, %v541
  %v543 = vpop.f32.mrb[0].mxu0
  %544 = vmatprep.mubr.f32.mxu0 0.0
  %545 = vmatmul.mubr.f32.gmra.mrb[0].mxu0 %v205
  %v546 = vpop.f32.mrb[0].mxu0
  %v547 = vadd.f32 %v93, %v546
  %v548 = vpop.f32.mrb[0].mxu0
  %549 = vmatprep.mubr.f32.mxu0 0.0
  %550 = vmatmul.mubr.f32.gmra.mrb[0].mxu0 %v208
  %v551 = vpop.f32.mrb[0].mxu0
  %v552 = vadd.f32 %v93, %v551
  %v553 = vpop.f32.mrb[0].mxu0
  %554 = vmatprep.mubr.f32.mxu0 0.0
  %555 = vmatmul.mubr.f32.gmra.mrb[0].mxu0 %v211
  %v556 = vpop.f32.mrb[0].mxu0
  %v557 = vadd.f32 %v93, %v556
  %v558 = vpop.f32.mrb[0].mxu0
  %559 = vmatprep.mubr.f32.mxu0 0.0
  %560 = vmatmul.mubr.f32.gmra.mrb[0].mxu0 %v214
  %v561 = vpop.f32.mrb[0].mxu0
  %v562 = vadd.f32 %v93, %v561
  %v563 = vpop.f32.mrb[0].mxu0
  %564 = vmatprep.mubr.f32.mxu0 0.0
  %565 = vmatmul.mubr.f32.gmra.mrb[0].mxu0 %v217
  %v566 = vpop.f32.mrb[0].mxu0
  %v567 = vadd.f32 %v93, %v566
  %v568 = vpop.f32.mrb[0].mxu0
  %569 = vmatprep.mubr.f32.mxu0 0.0
  %570 = vmatmul.mubr.f32.gmra.mrb[0].mxu0 %v220
  %v571 = vpop.f32.mrb[0].mxu0
  %v572 = vadd.f32 %v93, %v571
  %v573 = vpop.f32.mrb[0].mxu0
  %574 = vmatprep.mubr.f32.mxu0 0.0
  %575 = vmatmul.mubr.f32.gmra.mrb[0].mxu0 %v223
  %v576 = vpop.f32.mrb[0].mxu0
  %v577 = vadd.f32 %v93, %v576
  %v578 = vpop.f32.mrb[0].mxu0
  %579 = vmatprep.mubr.f32.mxu0 0.0
  %580 = vmatmul.mubr.f32.gmra.mrb[0].mxu0 %v226
  %v581 = vpop.f32.mrb[0].mxu0
  %v582 = vadd.f32 %v93, %v581
  %v583 = vpop.f32.mrb[0].mxu0
  %584 = vmatprep.mubr.f32.mxu0 0.0
  %585 = vmatmul.mubr.f32.gmra.mrb[0].mxu0 %v229
  %v586 = vpop.f32.mrb[0].mxu0
  %v587 = vadd.f32 %v93, %v586
  %v588 = vpop.f32.mrb[0].mxu0
  %589 = vmatprep.mubr.f32.mxu0 0.0
  %590 = vmatmul.mubr.f32.gmra.mrb[0].mxu0 %v232
  %v591 = vpop.f32.mrb[0].mxu0
  %v592 = vadd.f32 %v93, %v591
  %v593 = vpop.f32.mrb[0].mxu0
  %594 = vmatprep.mubr.f32.mxu0 0.0
  %595 = vmatmul.mubr.f32.gmra.mrb[0].mxu0 %v235
  %v596 = vpop.f32.mrb[0].mxu0
  %v597 = vadd.f32 %v93, %v596
  %v598 = vpop.f32.mrb[0].mxu0
  %599 = vmatprep.mubr.f32.mxu0 0.0
  %600 = vmatmul.mubr.f32.gmra.mrb[0].mxu0 %v238
  %v601 = vpop.f32.mrb[0].mxu0
  %v602 = vadd.f32 %v93, %v601
  %v603 = vpop.f32.mrb[0].mxu0
  %604 = vmatprep.mubr.f32.mxu0 0.0
  %605 = vmatmul.mubr.f32.gmra.mrb[0].mxu0 %v241
  %v606 = vpop.f32.mrb[0].mxu0
  %v607 = vadd.f32 %v93, %v606
  %v608 = vpop.f32.mrb[0].mxu0
  %609 = vmatprep.mubr.f32.mxu0 0.0
  %610 = vmatmul.mubr.f32.gmra.mrb[0].mxu0 %v244
  %v611 = vpop.f32.mrb[0].mxu0
  %v612 = vadd.f32 %v93, %v611
  %v613 = vpop.f32.mrb[0].mxu0
  %614 = vmatprep.mubr.f32.mxu0 0.0
  %615 = vmatmul.mubr.f32.gmra.mrb[0].mxu0 %v247
  %v616 = vpop.f32.mrb[0].mxu0
  %v617 = vadd.f32 %v93, %v616
  %v618 = vpop.f32.mrb[0].mxu0
  %619 = vmatprep.mubr.f32.mxu0 0.0
  %620 = vmatmul.mubr.f32.gmra.mrb[0].mxu0 %v250
  %v621 = vpop.f32.mrb[0].mxu0
  %v622 = vadd.f32 %v93, %v621
  %v623 = vpop.f32.mrb[0].mxu0
  %624 = vmatprep.mubr.f32.mxu0 0.0
  %625 = vmatmul.mubr.f32.gmra.mrb[0].mxu0 %v253
  %v626 = vpop.f32.mrb[0].mxu0
  %v627 = vadd.f32 %v93, %v626
  %v628 = vpop.f32.mrb[0].mxu0
  %629 = vmatprep.mubr.f32.mxu0 0.0
  %630 = vmatmul.mubr.f32.gmra.mrb[0].mxu0 %v256
  %v631 = vpop.f32.mrb[0].mxu0
  %v632 = vadd.f32 %v93, %v631
  %v633 = vpop.f32.mrb[0].mxu0
  %634 = vmatprep.mubr.f32.mxu0 0.0
  %635 = vmatmul.mubr.f32.gmra.mrb[0].mxu0 %v259
  %v636 = vpop.f32.mrb[0].mxu0
  %v637 = vadd.f32 %v93, %v636
  %v638 = vpop.f32.mrb[0].mxu0
  %639 = vmatprep.mubr.f32.mxu0 0.0
  %640 = vmatmul.mubr.f32.gmra.mrb[0].mxu0 %v262
  %v641 = vpop.f32.mrb[0].mxu0
  %v642 = vadd.f32 %v93, %v641
  %v643 = vpop.f32.mrb[0].mxu0
  %644 = vmatprep.mubr.f32.mxu0 0.0
  %645 = vmatmul.mubr.f32.gmra.mrb[0].mxu0 %v265
  %v646 = vpop.f32.mrb[0].mxu0
  %v647 = vadd.f32 %v93, %v646
  %v648 = vpop.f32.mrb[0].mxu0
  %649 = vmatprep.mubr.f32.mxu0 0.0
  %650 = vmatmul.mubr.f32.gmra.mrb[0].mxu0 %v268
  %v651 = vpop.f32.mrb[0].mxu0
  %v652 = vadd.f32 %v93, %v651
  %v653 = vpop.f32.mrb[0].mxu0
  %654 = vmatprep.mubr.f32.mxu0 0.0
  %655 = vmatmul.mubr.f32.gmra.mrb[0].mxu0 %v271
  %v656 = vpop.f32.mrb[0].mxu0
  %v657 = vadd.f32 %v93, %v656
  %v658 = vpop.f32.mrb[0].mxu0
  %659 = vmatprep.mubr.f32.mxu0 0.0
  %660 = vmatmul.mubr.f32.gmra.mrb[0].mxu0 %v274
  %v661 = vpop.f32.mrb[0].mxu0
  %v662 = vadd.f32 %v93, %v661
  %v663 = vpop.f32.mrb[0].mxu0
  %664 = vmatprep.mubr.f32.mxu0 0.0
  %665 = vmatmul.mubr.f32.gmra.mrb[0].mxu0 %v277
  %v666 = vpop.f32.mrb[0].mxu0
  %v667 = vadd.f32 %v93, %v666
  %v668 = vpop.f32.mrb[0].mxu0
  %669 = vmatprep.mubr.f32.mxu0 0.0
  %670 = vmatmul.mubr.f32.gmra.mrb[0].mxu0 %v280
  %v671 = vpop.f32.mrb[0].mxu0
  %v672 = vadd.f32 %v93, %v671
  %v673 = vpop.f32.mrb[0].mxu0
  %674 = vmatprep.mubr.f32.mxu0 0.0
  %675 = vmatmul.mubr.f32.gmra.mrb[0].mxu0 %v283
  %v676 = vpop.f32.mrb[0].mxu0
  %v677 = vadd.f32 %v93, %v676
  %v678 = vpop.f32.mrb[0].mxu0
  %679 = vmatprep.mubr.f32.mxu0 0.0
  %680 = vmatmul.mubr.f32.gmra.mrb[0].mxu0 %v286
  %v681 = vpop.f32.mrb[0].mxu0
  %v682 = vadd.f32 %v93, %v681
  %v683 = vpop.f32.mrb[0].mxu0
  %684 = vdwg.mxu0
  %v685 = vmul.f32 %v367, 0.5
  %v686 = vmul.f32 %v372, 0.5
  %v687 = vmul.f32 %v377, 0.5
  %v688 = vmul.f32 %v382, 0.5
  %v689 = vmul.f32 %v387, 0.5
  %v690 = vmul.f32 %v392, 0.5
  %v691 = vmul.f32 %v397, 0.5
  %v692 = vmul.f32 %v402, 0.5
  %v693 = vmul.f32 %v407, 0.5
  %v694 = vmul.f32 %v412, 0.5
  %v695 = vmul.f32 %v417, 0.5
  %v696 = vmul.f32 %v422, 0.5
  %v697 = vmul.f32 %v427, 0.5
  %v698 = vmul.f32 %v432, 0.5
  %v699 = vmul.f32 %v437, 0.5
  %v700 = vmul.f32 %v442, 0.5
  %v701 = vmul.f32 %v447, 0.5
  %v702 = vmul.f32 %v452, 0.5
  %v703 = vmul.f32 %v457, 0.5
  %v704 = vmul.f32 %v462, 0.5
  %v705 = vmul.f32 %v467, 0.5
  %v706 = vmul.f32 %v472, 0.5
  %v707 = vmul.f32 %v477, 0.5
  %v708 = vmul.f32 %v482, 0.5
  %v709 = vmul.f32 %v487, 0.5
  %v710 = vmul.f32 %v492, 0.5
  %v711 = vmul.f32 %v497, 0.5
  %v712 = vmul.f32 %v502, 0.5
  %v713 = vmul.f32 %v507, 0.5
  %v714 = vmul.f32 %v512, 0.5
  %v715 = vmul.f32 %v517, 0.5
  %v716 = vmul.f32 %v522, 0.5
  %v717 = vmul.f32 %v527, 0.5
  %v718 = vmul.f32 %v532, 0.5
  %v719 = vmul.f32 %v537, 0.5
  %v720 = vmul.f32 %v542, 0.5
  %v721 = vmul.f32 %v547, 0.5
  %v722 = vmul.f32 %v552, 0.5
  %v723 = vmul.f32 %v557, 0.5
  %v724 = vmul.f32 %v562, 0.5
  %v725 = vmul.f32 %v567, 0.5
  %v726 = vmul.f32 %v572, 0.5
  %v727 = vmul.f32 %v577, 0.5
  %v728 = vmul.f32 %v582, 0.5
  %v729 = vmul.f32 %v587, 0.5
  %v730 = vmul.f32 %v592, 0.5
  %v731 = vmul.f32 %v597, 0.5
  %v732 = vmul.f32 %v602, 0.5
  %v733 = vmul.f32 %v607, 0.5
  %v734 = vmul.f32 %v612, 0.5
  %v735 = vmul.f32 %v617, 0.5
  %v736 = vmul.f32 %v622, 0.5
  %v737 = vmul.f32 %v627, 0.5
  %v738 = vmul.f32 %v632, 0.5
  %v739 = vmul.f32 %v637, 0.5
  %v740 = vmul.f32 %v642, 0.5
  %v741 = vmul.f32 %v647, 0.5
  %v742 = vmul.f32 %v652, 0.5
  %v743 = vmul.f32 %v657, 0.5
  %v744 = vmul.f32 %v662, 0.5
  %v745 = vmul.f32 %v667, 0.5
  %v746 = vmul.f32 %v672, 0.5
  %v747 = vmul.f32 %v677, 0.5
  %v748 = vmul.f32 %v682, 0.5
  %v749 = vmul.f32 %v367, 0.70710677
  %v750 = vmul.f32 %v372, 0.70710677
  %v751 = vmul.f32 %v377, 0.70710677
  %v752 = vmul.f32 %v382, 0.70710677
  %v753 = vmul.f32 %v387, 0.70710677
  %v754 = vmul.f32 %v392, 0.70710677
  %v755 = vmul.f32 %v397, 0.70710677
  %v756 = vmul.f32 %v402, 0.70710677
  %v757 = vmul.f32 %v407, 0.70710677
  %v758 = vmul.f32 %v412, 0.70710677
  %v759 = vmul.f32 %v417, 0.70710677
  %v760 = vmul.f32 %v422, 0.70710677
  %v761 = vmul.f32 %v427, 0.70710677
  %v762 = vmul.f32 %v432, 0.70710677
  %v763 = vmul.f32 %v437, 0.70710677
  %v764 = vmul.f32 %v442, 0.70710677
  %v765 = vmul.f32 %v447, 0.70710677
  %v766 = vmul.f32 %v452, 0.70710677
  %v767 = vmul.f32 %v457, 0.70710677
  %v768 = vmul.f32 %v462, 0.70710677
  %v769 = vmul.f32 %v467, 0.70710677
  %v770 = vmul.f32 %v472, 0.70710677
  %v771 = vmul.f32 %v477, 0.70710677
  %v772 = vmul.f32 %v482, 0.70710677
  %v773 = vmul.f32 %v487, 0.70710677
  %v774 = vmul.f32 %v492, 0.70710677
  %v775 = vmul.f32 %v497, 0.70710677
  %v776 = vmul.f32 %v502, 0.70710677
  %v777 = vmul.f32 %v507, 0.70710677
  %v778 = vmul.f32 %v512, 0.70710677
  %v779 = vmul.f32 %v517, 0.70710677
  %v780 = vmul.f32 %v522, 0.70710677
  %v781 = vmul.f32 %v527, 0.70710677
  %v782 = vmul.f32 %v532, 0.70710677
  %v783 = vmul.f32 %v537, 0.70710677
  %v784 = vmul.f32 %v542, 0.70710677
  %v785 = vmul.f32 %v547, 0.70710677
  %v786 = vmul.f32 %v552, 0.70710677
  %v787 = vmul.f32 %v557, 0.70710677
  %v788 = vmul.f32 %v562, 0.70710677
  %v789 = vmul.f32 %v567, 0.70710677
  %v790 = vmul.f32 %v572, 0.70710677
  %v791 = vmul.f32 %v577, 0.70710677
  %v792 = vmul.f32 %v582, 0.70710677
  %v793 = vmul.f32 %v587, 0.70710677
  %v794 = vmul.f32 %v592, 0.70710677
  %v795 = vmul.f32 %v597, 0.70710677
  %v796 = vmul.f32 %v602, 0.70710677
  %v797 = vmul.f32 %v607, 0.70710677
  %v798 = vmul.f32 %v612, 0.70710677
  %v799 = vmul.f32 %v617, 0.70710677
  %v800 = vmul.f32 %v622, 0.70710677
  %v801 = vmul.f32 %v627, 0.70710677
  %v802 = vmul.f32 %v632, 0.70710677
  %v803 = vmul.f32 %v637, 0.70710677
  %v804 = vmul.f32 %v642, 0.70710677
  %v805 = vmul.f32 %v647, 0.70710677
  %v806 = vmul.f32 %v652, 0.70710677
  %v807 = vmul.f32 %v657, 0.70710677
  %v808 = vmul.f32 %v662, 0.70710677
  %v809 = vmul.f32 %v667, 0.70710677
  %v810 = vmul.f32 %v672, 0.70710677
  %v811 = vmul.f32 %v677, 0.70710677
  %v812 = vmul.f32 %v682, 0.70710677
  %v813 = verf.f32.pop %v749
  %v814 = verf.f32.pop %v750
  %v815 = verf.f32.pop %v751
  %v816 = verf.f32.pop %v752
  %v817 = verf.f32.pop %v753
  %v818 = verf.f32.pop %v754
  %v819 = verf.f32.pop %v755
  %v820 = verf.f32.pop %v756
  %v821 = verf.f32.pop %v757
  %v822 = verf.f32.pop %v758
  %v823 = verf.f32.pop %v759
  %v824 = verf.f32.pop %v760
  %v825 = verf.f32.pop %v761
  %v826 = verf.f32.pop %v762
  %v827 = verf.f32.pop %v763
  %v828 = verf.f32.pop %v764
  %v829 = verf.f32.pop %v765
  %v830 = verf.f32.pop %v766
  %v831 = verf.f32.pop %v767
  %v832 = verf.f32.pop %v768
  %v833 = verf.f32.pop %v769
  %v834 = verf.f32.pop %v770
  %v835 = verf.f32.pop %v771
  %v836 = verf.f32.pop %v772
  %v837 = verf.f32.pop %v773
  %v838 = verf.f32.pop %v774
  %v839 = verf.f32.pop %v775
  %v840 = verf.f32.pop %v776
  %v841 = verf.f32.pop %v777
  %v842 = verf.f32.pop %v778
  %v843 = verf.f32.pop %v779
  %v844 = verf.f32.pop %v780
  %v845 = verf.f32.pop %v781
  %v846 = verf.f32.pop %v782
  %v847 = verf.f32.pop %v783
  %v848 = verf.f32.pop %v784
  %v849 = verf.f32.pop %v785
  %v850 = verf.f32.pop %v786
  %v851 = verf.f32.pop %v787
  %v852 = verf.f32.pop %v788
  %v853 = verf.f32.pop %v789
  %v854 = verf.f32.pop %v790
  %v855 = verf.f32.pop %v791
  %v856 = verf.f32.pop %v792
  %v857 = verf.f32.pop %v793
  %v858 = verf.f32.pop %v794
  %v859 = verf.f32.pop %v795
  %v860 = verf.f32.pop %v796
  %v861 = verf.f32.pop %v797
  %v862 = verf.f32.pop %v798
  %v863 = verf.f32.pop %v799
  %v864 = verf.f32.pop %v800
  %v865 = verf.f32.pop %v801
  %v866 = verf.f32.pop %v802
  %v867 = verf.f32.pop %v803
  %v868 = verf.f32.pop %v804
  %v869 = verf.f32.pop %v805
  %v870 = verf.f32.pop %v806
  %v871 = verf.f32.pop %v807
  %v872 = verf.f32.pop %v808
  %v873 = verf.f32.pop %v809
  %v874 = verf.f32.pop %v810
  %v875 = verf.f32.pop %v811
  %v876 = verf.f32.pop %v812
  %v877 = vadd.f32 %v813, 1.0
  %v878 = vadd.f32 %v814, 1.0
  %v879 = vadd.f32 %v815, 1.0
  %v880 = vadd.f32 %v816, 1.0
  %v881 = vadd.f32 %v817, 1.0
  %v882 = vadd.f32 %v818, 1.0
  %v883 = vadd.f32 %v819, 1.0
  %v884 = vadd.f32 %v820, 1.0
  %v885 = vadd.f32 %v821, 1.0
  %v886 = vadd.f32 %v822, 1.0
  %v887 = vadd.f32 %v823, 1.0
  %v888 = vadd.f32 %v824, 1.0
  %v889 = vadd.f32 %v825, 1.0
  %v890 = vadd.f32 %v826, 1.0
  %v891 = vadd.f32 %v827, 1.0
  %v892 = vadd.f32 %v828, 1.0
  %v893 = vadd.f32 %v829, 1.0
  %v894 = vadd.f32 %v830, 1.0
  %v895 = vadd.f32 %v831, 1.0
  %v896 = vadd.f32 %v832, 1.0
  %v897 = vadd.f32 %v833, 1.0
  %v898 = vadd.f32 %v834, 1.0
  %v899 = vadd.f32 %v835, 1.0
  %v900 = vadd.f32 %v836, 1.0
  %v901 = vadd.f32 %v837, 1.0
  %v902 = vadd.f32 %v838, 1.0
  %v903 = vadd.f32 %v839, 1.0
  %v904 = vadd.f32 %v840, 1.0
  %v905 = vadd.f32 %v841, 1.0
  %v906 = vadd.f32 %v842, 1.0
  %v907 = vadd.f32 %v843, 1.0
  %v908 = vadd.f32 %v844, 1.0
  %v909 = vadd.f32 %v845, 1.0
  %v910 = vadd.f32 %v846, 1.0
  %v911 = vadd.f32 %v847, 1.0
  %v912 = vadd.f32 %v848, 1.0
  %v913 = vadd.f32 %v849, 1.0
  %v914 = vadd.f32 %v850, 1.0
  %v915 = vadd.f32 %v851, 1.0
  %v916 = vadd.f32 %v852, 1.0
  %v917 = vadd.f32 %v853, 1.0
  %v918 = vadd.f32 %v854, 1.0
  %v919 = vadd.f32 %v855, 1.0
  %v920 = vadd.f32 %v856, 1.0
  %v921 = vadd.f32 %v857, 1.0
  %v922 = vadd.f32 %v858, 1.0
  %v923 = vadd.f32 %v859, 1.0
  %v924 = vadd.f32 %v860, 1.0
  %v925 = vadd.f32 %v861, 1.0
  %v926 = vadd.f32 %v862, 1.0
  %v927 = vadd.f32 %v863, 1.0
  %v928 = vadd.f32 %v864, 1.0
  %v929 = vadd.f32 %v865, 1.0
  %v930 = vadd.f32 %v866, 1.0
  %v931 = vadd.f32 %v867, 1.0
  %v932 = vadd.f32 %v868, 1.0
  %v933 = vadd.f32 %v869, 1.0
  %v934 = vadd.f32 %v870, 1.0
  %v935 = vadd.f32 %v871, 1.0
  %v936 = vadd.f32 %v872, 1.0
  %v937 = vadd.f32 %v873, 1.0
  %v938 = vadd.f32 %v874, 1.0
  %v939 = vadd.f32 %v875, 1.0
  %v940 = vadd.f32 %v876, 1.0
  %v941 = vmul.f32 %v685, %v877
  %v942 = vmul.f32 %v686, %v878
  %v943 = vmul.f32 %v687, %v879
  %v944 = vmul.f32 %v688, %v880
  %v945 = vmul.f32 %v689, %v881
  %v946 = vmul.f32 %v690, %v882
  %v947 = vmul.f32 %v691, %v883
  %v948 = vmul.f32 %v692, %v884
  %v949 = vmul.f32 %v693, %v885
  %v950 = vmul.f32 %v694, %v886
  %v951 = vmul.f32 %v695, %v887
  %v952 = vmul.f32 %v696, %v888
  %v953 = vmul.f32 %v697, %v889
  %v954 = vmul.f32 %v698, %v890
  %v955 = vmul.f32 %v699, %v891
  %v956 = vmul.f32 %v700, %v892
  %v957 = vmul.f32 %v701, %v893
  %v958 = vmul.f32 %v702, %v894
  %v959 = vmul.f32 %v703, %v895
  %v960 = vmul.f32 %v704, %v896
  %v961 = vmul.f32 %v705, %v897
  %v962 = vmul.f32 %v706, %v898
  %v963 = vmul.f32 %v707, %v899
  %v964 = vmul.f32 %v708, %v900
  %v965 = vmul.f32 %v709, %v901
  %v966 = vmul.f32 %v710, %v902
  %v967 = vmul.f32 %v711, %v903
  %v968 = vmul.f32 %v712, %v904
  %v969 = vmul.f32 %v713, %v905
  %v970 = vmul.f32 %v714, %v906
  %v971 = vmul.f32 %v715, %v907
  %v972 = vmul.f32 %v716, %v908
  %v973 = vmul.f32 %v717, %v909
  %v974 = vmul.f32 %v718, %v910
  %v975 = vmul.f32 %v719, %v911
  %v976 = vmul.f32 %v720, %v912
  %v977 = vmul.f32 %v721, %v913
  %v978 = vmul.f32 %v722, %v914
  %v979 = vmul.f32 %v723, %v915
  %v980 = vmul.f32 %v724, %v916
  %v981 = vmul.f32 %v725, %v917
  %v982 = vmul.f32 %v726, %v918
  %v983 = vmul.f32 %v727, %v919
  %v984 = vmul.f32 %v728, %v920
  %v985 = vmul.f32 %v729, %v921
  %v986 = vmul.f32 %v730, %v922
  %v987 = vmul.f32 %v731, %v923
  %v988 = vmul.f32 %v732, %v924
  %v989 = vmul.f32 %v733, %v925
  %v990 = vmul.f32 %v734, %v926
  %v991 = vmul.f32 %v735, %v927
  %v992 = vmul.f32 %v736, %v928
  %v993 = vmul.f32 %v737, %v929
  %v994 = vmul.f32 %v738, %v930
  %v995 = vmul.f32 %v739, %v931
  %v996 = vmul.f32 %v740, %v932
  %v997 = vmul.f32 %v741, %v933
  %v998 = vmul.f32 %v742, %v934
  %v999 = vmul.f32 %v743, %v935
  %v1000 = vmul.f32 %v744, %v936
  %v1001 = vmul.f32 %v745, %v937
  %v1002 = vmul.f32 %v746, %v938
  %v1003 = vmul.f32 %v747, %v939
  %v1004 = vmul.f32 %v748, %v940
  %v1005 = vld [vmem:[%s3] sm:$0xff]
  %v1006 = vld [vmem:[%s4] sm:$0x1]
  %v1008 = vlaneseq
  %v1009 = vshrl.u32 %v1008, 7
  %v1010 = vsub.s32 0, %v1009
  %v1011 = vrot.slane %v1006, %v1010
  %vm1013 = vcmask 261120
  %v1015 = vsel %vm1013, %v941, 0
  %v1018 = vsel %vm1013, %v942, 0
  %v1021 = vsel %vm1013, %v943, 0
  %v1024 = vsel %vm1013, %v944, 0
  %v1027 = vsel %vm1013, %v945, 0
  %v1030 = vsel %vm1013, %v946, 0
  %v1033 = vsel %vm1013, %v947, 0
  %v1036 = vsel %vm1013, %v948, 0
  %v1039 = vsel %vm1013, %v949, 0
  %v1042 = vsel %vm1013, %v950, 0
  %v1045 = vsel %vm1013, %v951, 0
  %v1048 = vsel %vm1013, %v952, 0
  %v1051 = vsel %vm1013, %v953, 0
  %v1054 = vsel %vm1013, %v954, 0
  %v1057 = vsel %vm1013, %v955, 0
  %v1060 = vsel %vm1013, %v956, 0
  %v1063 = vsel %vm1013, %v957, 0
  %v1066 = vsel %vm1013, %v958, 0
  %v1069 = vsel %vm1013, %v959, 0
  %v1072 = vsel %vm1013, %v960, 0
  %v1075 = vsel %vm1013, %v961, 0
  %v1078 = vsel %vm1013, %v962, 0
  %v1081 = vsel %vm1013, %v963, 0
  %v1084 = vsel %vm1013, %v964, 0
  %v1087 = vsel %vm1013, %v965, 0
  %v1090 = vsel %vm1013, %v966, 0
  %v1093 = vsel %vm1013, %v967, 0
  %v1096 = vsel %vm1013, %v968, 0
  %v1099 = vsel %vm1013, %v969, 0
  %v1102 = vsel %vm1013, %v970, 0
  %v1105 = vsel %vm1013, %v971, 0
  %v1108 = vsel %vm1013, %v972, 0
  %v1111 = vsel %vm1013, %v973, 0
  %v1114 = vsel %vm1013, %v974, 0
  %v1117 = vsel %vm1013, %v975, 0
  %v1120 = vsel %vm1013, %v976, 0
  %v1123 = vsel %vm1013, %v977, 0
  %v1126 = vsel %vm1013, %v978, 0
  %v1129 = vsel %vm1013, %v979, 0
  %v1132 = vsel %vm1013, %v980, 0
  %v1135 = vsel %vm1013, %v981, 0
  %v1138 = vsel %vm1013, %v982, 0
  %v1141 = vsel %vm1013, %v983, 0
  %v1144 = vsel %vm1013, %v984, 0
  %v1147 = vsel %vm1013, %v985, 0
  %v1150 = vsel %vm1013, %v986, 0
  %v1153 = vsel %vm1013, %v987, 0
  %v1156 = vsel %vm1013, %v988, 0
  %v1159 = vsel %vm1013, %v989, 0
  %v1162 = vsel %vm1013, %v990, 0
  %v1165 = vsel %vm1013, %v991, 0
  %v1168 = vsel %vm1013, %v992, 0
  %v1171 = vsel %vm1013, %v993, 0
  %v1174 = vsel %vm1013, %v994, 0
  %v1177 = vsel %vm1013, %v995, 0
  %v1180 = vsel %vm1013, %v996, 0
  %v1183 = vsel %vm1013, %v997, 0
  %v1186 = vsel %vm1013, %v998, 0
  %v1189 = vsel %vm1013, %v999, 0
  %v1192 = vsel %vm1013, %v1000, 0
  %v1195 = vsel %vm1013, %v1001, 0
  %v1198 = vsel %vm1013, %v1002, 0
  %v1201 = vsel %vm1013, %v1003, 0
  %v1204 = vsel %vm1013, %v1004, 0
  %v1207 = vsel %vm1013, %v1005, 0
  %1209 = vmatprep.subr.mxu0 0.0
  %1210 = vmatpush1.xpose.msra.mxu0 %v1207
  %1211 = vmatprep.subr.mxu0 0.0
  %1212 = vmatpush1.xpose.msra.mxu0 0.0
  %1213 = vmatprep.subr.mxu0 0.0
  %1214 = vmatpush1.xpose.msra.mxu0 0.0
  %1215 = vmatprep.subr.mxu0 0.0
  %1216 = vmatpush1.xpose.msra.mxu0 0.0
  %1217 = vmatprep.subr.mxu0 0.0
  %1218 = vmatpush1.xpose.msra.mxu0 0.0
  %1219 = vmatprep.subr.mxu0 0.0
  %1220 = vmatpush1.xpose.msra.mxu0 0.0
  %1221 = vmatprep.subr.mxu0 0.0
  %1222 = vmatpush1.xpose.msra.mxu0 0.0
  %1223 = vmatprep.subr.mxu0 0.0
  %1224 = vmatpush1.xpose.msra.mxu0 0.0
  %1225 = vmatprep.subr.mxu0 0.0
  %1226 = vmatpush1.xpose.msra.mxu0 0.0
  %1227 = vmatprep.subr.mxu0 0.0
  %1228 = vmatpush1.xpose.msra.mxu0 0.0
  %1229 = vmatprep.subr.mxu0 0.0
  %1230 = vmatpush1.xpose.msra.mxu0 0.0
  %1231 = vmatprep.subr.mxu0 0.0
  %1232 = vmatpush1.xpose.msra.mxu0 0.0
  %1233 = vmatprep.subr.mxu0 0.0
  %1234 = vmatpush1.xpose.msra.mxu0 0.0
  %1235 = vmatprep.subr.mxu0 0.0
  %1236 = vmatpush1.xpose.msra.mxu0 0.0
  %1237 = vmatprep.subr.mxu0 0.0
  %1238 = vmatpush1.xpose.msra.mxu0 0.0
  %1239 = vmatprep.subr.mxu0 0.0
  %1240 = vmatpush1.xpose.msra.mxu0 0.0
  %1241 = vmatprep.subr.mxu0 0.0
  %1242 = vmatpush1.xpose.msra.mxu0 0.0
  %1243 = vmatprep.subr.mxu0 0.0
  %1244 = vmatpush1.xpose.msra.mxu0 0.0
  %1245 = vmatprep.subr.mxu0 0.0
  %1246 = vmatpush1.xpose.msra.mxu0 0.0
  %1247 = vmatprep.subr.mxu0 0.0
  %1248 = vmatpush1.xpose.msra.mxu0 0.0
  %1249 = vmatprep.subr.mxu0 0.0
  %1250 = vmatpush1.xpose.msra.mxu0 0.0
  %1251 = vmatprep.subr.mxu0 0.0
  %1252 = vmatpush1.xpose.msra.mxu0 0.0
  %1253 = vmatprep.subr.mxu0 0.0
  %1254 = vmatpush1.xpose.msra.mxu0 0.0
  %1255 = vmatprep.subr.mxu0 0.0
  %1256 = vmatpush1.xpose.msra.mxu0 0.0
  %1257 = vmatprep.subr.mxu0 0.0
  %1258 = vmatpush1.xpose.msra.mxu0 0.0
  %1259 = vmatprep.subr.mxu0 0.0
  %1260 = vmatpush1.xpose.msra.mxu0 0.0
  %1261 = vmatprep.subr.mxu0 0.0
  %1262 = vmatpush1.xpose.msra.mxu0 0.0
  %1263 = vmatprep.subr.mxu0 0.0
  %1264 = vmatpush1.xpose.msra.mxu0 0.0
  %1265 = vmatprep.subr.mxu0 0.0
  %1266 = vmatpush1.xpose.msra.mxu0 0.0
  %1267 = vmatprep.subr.mxu0 0.0
  %1268 = vmatpush1.xpose.msra.mxu0 0.0
  %1269 = vmatprep.subr.mxu0 0.0
  %1270 = vmatpush1.xpose.msra.mxu0 0.0
  %1271 = vmatprep.subr.mxu0 0.0
  %1272 = vmatpush1.xpose.msra.mxu0 0.0
  %1273 = vmatprep.mubr.f32.mxu0 0.0
  %1274 = vmatmul.mubr.f32.gmra.mrb[0].mxu0 %v1015
  %v1275 = vpop.f32.mrb[0].mxu0
  %v1276 = vadd.f32 %v1011, %v1275
  %v1277 = vpop.f32.mrb[0].mxu0
  %1278 = vmatprep.mubr.f32.mxu0 0.0
  %1279 = vmatmul.mubr.f32.gmra.mrb[0].mxu0 %v1018
  %v1280 = vpop.f32.mrb[0].mxu0
  %v1281 = vadd.f32 %v1011, %v1280
  %v1282 = vpop.f32.mrb[0].mxu0
  %1283 = vmatprep.mubr.f32.mxu0 0.0
  %1284 = vmatmul.mubr.f32.gmra.mrb[0].mxu0 %v1021
  %v1285 = vpop.f32.mrb[0].mxu0
  %v1286 = vadd.f32 %v1011, %v1285
  %v1287 = vpop.f32.mrb[0].mxu0
  %1288 = vmatprep.mubr.f32.mxu0 0.0
  %1289 = vmatmul.mubr.f32.gmra.mrb[0].mxu0 %v1024
  %v1290 = vpop.f32.mrb[0].mxu0
  %v1291 = vadd.f32 %v1011, %v1290
  %v1292 = vpop.f32.mrb[0].mxu0
  %1293 = vmatprep.mubr.f32.mxu0 0.0
  %1294 = vmatmul.mubr.f32.gmra.mrb[0].mxu0 %v1027
  %v1295 = vpop.f32.mrb[0].mxu0
  %v1296 = vadd.f32 %v1011, %v1295
  %v1297 = vpop.f32.mrb[0].mxu0
  %1298 = vmatprep.mubr.f32.mxu0 0.0
  %1299 = vmatmul.mubr.f32.gmra.mrb[0].mxu0 %v1030
  %v1300 = vpop.f32.mrb[0].mxu0
  %v1301 = vadd.f32 %v1011, %v1300
  %v1302 = vpop.f32.mrb[0].mxu0
  %1303 = vmatprep.mubr.f32.mxu0 0.0
  %1304 = vmatmul.mubr.f32.gmra.mrb[0].mxu0 %v1033
  %v1305 = vpop.f32.mrb[0].mxu0
  %v1306 = vadd.f32 %v1011, %v1305
  %v1307 = vpop.f32.mrb[0].mxu0
  %1308 = vmatprep.mubr.f32.mxu0 0.0
  %1309 = vmatmul.mubr.f32.gmra.mrb[0].mxu0 %v1036
  %v1310 = vpop.f32.mrb[0].mxu0
  %v1311 = vadd.f32 %v1011, %v1310
  %v1312 = vpop.f32.mrb[0].mxu0
  %1313 = vmatprep.mubr.f32.mxu0 0.0
  %1314 = vmatmul.mubr.f32.gmra.mrb[0].mxu0 %v1039
  %v1315 = vpop.f32.mrb[0].mxu0
  %v1316 = vadd.f32 %v1011, %v1315
  %v1317 = vpop.f32.mrb[0].mxu0
  %1318 = vmatprep.mubr.f32.mxu0 0.0
  %1319 = vmatmul.mubr.f32.gmra.mrb[0].mxu0 %v1042
  %v1320 = vpop.f32.mrb[0].mxu0
  %v1321 = vadd.f32 %v1011, %v1320
  %v1322 = vpop.f32.mrb[0].mxu0
  %1323 = vmatprep.mubr.f32.mxu0 0.0
  %1324 = vmatmul.mubr.f32.gmra.mrb[0].mxu0 %v1045
  %v1325 = vpop.f32.mrb[0].mxu0
  %v1326 = vadd.f32 %v1011, %v1325
  %v1327 = vpop.f32.mrb[0].mxu0
  %1328 = vmatprep.mubr.f32.mxu0 0.0
  %1329 = vmatmul.mubr.f32.gmra.mrb[0].mxu0 %v1048
  %v1330 = vpop.f32.mrb[0].mxu0
  %v1331 = vadd.f32 %v1011, %v1330
  %v1332 = vpop.f32.mrb[0].mxu0
  %1333 = vmatprep.mubr.f32.mxu0 0.0
  %1334 = vmatmul.mubr.f32.gmra.mrb[0].mxu0 %v1051
  %v1335 = vpop.f32.mrb[0].mxu0
  %v1336 = vadd.f32 %v1011, %v1335
  %v1337 = vpop.f32.mrb[0].mxu0
  %1338 = vmatprep.mubr.f32.mxu0 0.0
  %1339 = vmatmul.mubr.f32.gmra.mrb[0].mxu0 %v1054
  %v1340 = vpop.f32.mrb[0].mxu0
  %v1341 = vadd.f32 %v1011, %v1340
  %v1342 = vpop.f32.mrb[0].mxu0
  %1343 = vmatprep.mubr.f32.mxu0 0.0
  %1344 = vmatmul.mubr.f32.gmra.mrb[0].mxu0 %v1057
  %v1345 = vpop.f32.mrb[0].mxu0
  %v1346 = vadd.f32 %v1011, %v1345
  %v1347 = vpop.f32.mrb[0].mxu0
  %1348 = vmatprep.mubr.f32.mxu0 0.0
  %1349 = vmatmul.mubr.f32.gmra.mrb[0].mxu0 %v1060
  %v1350 = vpop.f32.mrb[0].mxu0
  %v1351 = vadd.f32 %v1011, %v1350
  %v1352 = vpop.f32.mrb[0].mxu0
  %1353 = vmatprep.mubr.f32.mxu0 0.0
  %1354 = vmatmul.mubr.f32.gmra.mrb[0].mxu0 %v1063
  %v1355 = vpop.f32.mrb[0].mxu0
  %v1356 = vadd.f32 %v1011, %v1355
  %v1357 = vpop.f32.mrb[0].mxu0
  %1358 = vmatprep.mubr.f32.mxu0 0.0
  %1359 = vmatmul.mubr.f32.gmra.mrb[0].mxu0 %v1066
  %v1360 = vpop.f32.mrb[0].mxu0
  %v1361 = vadd.f32 %v1011, %v1360
  %v1362 = vpop.f32.mrb[0].mxu0
  %1363 = vmatprep.mubr.f32.mxu0 0.0
  %1364 = vmatmul.mubr.f32.gmra.mrb[0].mxu0 %v1069
  %v1365 = vpop.f32.mrb[0].mxu0
  %v1366 = vadd.f32 %v1011, %v1365
  %v1367 = vpop.f32.mrb[0].mxu0
  %1368 = vmatprep.mubr.f32.mxu0 0.0
  %1369 = vmatmul.mubr.f32.gmra.mrb[0].mxu0 %v1072
  %v1370 = vpop.f32.mrb[0].mxu0
  %v1371 = vadd.f32 %v1011, %v1370
  %v1372 = vpop.f32.mrb[0].mxu0
  %1373 = vmatprep.mubr.f32.mxu0 0.0
  %1374 = vmatmul.mubr.f32.gmra.mrb[0].mxu0 %v1075
  %v1375 = vpop.f32.mrb[0].mxu0
  %v1376 = vadd.f32 %v1011, %v1375
  %v1377 = vpop.f32.mrb[0].mxu0
  %1378 = vmatprep.mubr.f32.mxu0 0.0
  %1379 = vmatmul.mubr.f32.gmra.mrb[0].mxu0 %v1078
  %v1380 = vpop.f32.mrb[0].mxu0
  %v1381 = vadd.f32 %v1011, %v1380
  %v1382 = vpop.f32.mrb[0].mxu0
  %1383 = vmatprep.mubr.f32.mxu0 0.0
  %1384 = vmatmul.mubr.f32.gmra.mrb[0].mxu0 %v1081
  %v1385 = vpop.f32.mrb[0].mxu0
  %v1386 = vadd.f32 %v1011, %v1385
  %v1387 = vpop.f32.mrb[0].mxu0
  %1388 = vmatprep.mubr.f32.mxu0 0.0
  %1389 = vmatmul.mubr.f32.gmra.mrb[0].mxu0 %v1084
  %v1390 = vpop.f32.mrb[0].mxu0
  %v1391 = vadd.f32 %v1011, %v1390
  %v1392 = vpop.f32.mrb[0].mxu0
  %1393 = vmatprep.mubr.f32.mxu0 0.0
  %1394 = vmatmul.mubr.f32.gmra.mrb[0].mxu0 %v1087
  %v1395 = vpop.f32.mrb[0].mxu0
  %v1396 = vadd.f32 %v1011, %v1395
  %v1397 = vpop.f32.mrb[0].mxu0
  %1398 = vmatprep.mubr.f32.mxu0 0.0
  %1399 = vmatmul.mubr.f32.gmra.mrb[0].mxu0 %v1090
  %v1400 = vpop.f32.mrb[0].mxu0
  %v1401 = vadd.f32 %v1011, %v1400
  %v1402 = vpop.f32.mrb[0].mxu0
  %1403 = vmatprep.mubr.f32.mxu0 0.0
  %1404 = vmatmul.mubr.f32.gmra.mrb[0].mxu0 %v1093
  %v1405 = vpop.f32.mrb[0].mxu0
  %v1406 = vadd.f32 %v1011, %v1405
  %v1407 = vpop.f32.mrb[0].mxu0
  %1408 = vmatprep.mubr.f32.mxu0 0.0
  %1409 = vmatmul.mubr.f32.gmra.mrb[0].mxu0 %v1096
  %v1410 = vpop.f32.mrb[0].mxu0
  %v1411 = vadd.f32 %v1011, %v1410
  %v1412 = vpop.f32.mrb[0].mxu0
  %1413 = vmatprep.mubr.f32.mxu0 0.0
  %1414 = vmatmul.mubr.f32.gmra.mrb[0].mxu0 %v1099
  %v1415 = vpop.f32.mrb[0].mxu0
  %v1416 = vadd.f32 %v1011, %v1415
  %v1417 = vpop.f32.mrb[0].mxu0
  %1418 = vmatprep.mubr.f32.mxu0 0.0
  %1419 = vmatmul.mubr.f32.gmra.mrb[0].mxu0 %v1102
  %v1420 = vpop.f32.mrb[0].mxu0
  %v1421 = vadd.f32 %v1011, %v1420
  %v1422 = vpop.f32.mrb[0].mxu0
  %1423 = vmatprep.mubr.f32.mxu0 0.0
  %1424 = vmatmul.mubr.f32.gmra.mrb[0].mxu0 %v1105
  %v1425 = vpop.f32.mrb[0].mxu0
  %v1426 = vadd.f32 %v1011, %v1425
  %v1427 = vpop.f32.mrb[0].mxu0
  %1428 = vmatprep.mubr.f32.mxu0 0.0
  %1429 = vmatmul.mubr.f32.gmra.mrb[0].mxu0 %v1108
  %v1430 = vpop.f32.mrb[0].mxu0
  %v1431 = vadd.f32 %v1011, %v1430
  %v1432 = vpop.f32.mrb[0].mxu0
  %1433 = vmatprep.mubr.f32.mxu0 0.0
  %1434 = vmatmul.mubr.f32.gmra.mrb[0].mxu0 %v1111
  %v1435 = vpop.f32.mrb[0].mxu0
  %v1436 = vadd.f32 %v1011, %v1435
  %v1437 = vpop.f32.mrb[0].mxu0
  %1438 = vmatprep.mubr.f32.mxu0 0.0
  %1439 = vmatmul.mubr.f32.gmra.mrb[0].mxu0 %v1114
  %v1440 = vpop.f32.mrb[0].mxu0
  %v1441 = vadd.f32 %v1011, %v1440
  %v1442 = vpop.f32.mrb[0].mxu0
  %1443 = vmatprep.mubr.f32.mxu0 0.0
  %1444 = vmatmul.mubr.f32.gmra.mrb[0].mxu0 %v1117
  %v1445 = vpop.f32.mrb[0].mxu0
  %v1446 = vadd.f32 %v1011, %v1445
  %v1447 = vpop.f32.mrb[0].mxu0
  %1448 = vmatprep.mubr.f32.mxu0 0.0
  %1449 = vmatmul.mubr.f32.gmra.mrb[0].mxu0 %v1120
  %v1450 = vpop.f32.mrb[0].mxu0
  %v1451 = vadd.f32 %v1011, %v1450
  %v1452 = vpop.f32.mrb[0].mxu0
  %1453 = vmatprep.mubr.f32.mxu0 0.0
  %1454 = vmatmul.mubr.f32.gmra.mrb[0].mxu0 %v1123
  %v1455 = vpop.f32.mrb[0].mxu0
  %v1456 = vadd.f32 %v1011, %v1455
  %v1457 = vpop.f32.mrb[0].mxu0
  %1458 = vmatprep.mubr.f32.mxu0 0.0
  %1459 = vmatmul.mubr.f32.gmra.mrb[0].mxu0 %v1126
  %v1460 = vpop.f32.mrb[0].mxu0
  %v1461 = vadd.f32 %v1011, %v1460
  %v1462 = vpop.f32.mrb[0].mxu0
  %1463 = vmatprep.mubr.f32.mxu0 0.0
  %1464 = vmatmul.mubr.f32.gmra.mrb[0].mxu0 %v1129
  %v1465 = vpop.f32.mrb[0].mxu0
  %v1466 = vadd.f32 %v1011, %v1465
  %v1467 = vpop.f32.mrb[0].mxu0
  %1468 = vmatprep.mubr.f32.mxu0 0.0
  %1469 = vmatmul.mubr.f32.gmra.mrb[0].mxu0 %v1132
  %v1470 = vpop.f32.mrb[0].mxu0
  %v1471 = vadd.f32 %v1011, %v1470
  %v1472 = vpop.f32.mrb[0].mxu0
  %1473 = vmatprep.mubr.f32.mxu0 0.0
  %1474 = vmatmul.mubr.f32.gmra.mrb[0].mxu0 %v1135
  %v1475 = vpop.f32.mrb[0].mxu0
  %v1476 = vadd.f32 %v1011, %v1475
  %v1477 = vpop.f32.mrb[0].mxu0
  %1478 = vmatprep.mubr.f32.mxu0 0.0
  %1479 = vmatmul.mubr.f32.gmra.mrb[0].mxu0 %v1138
  %v1480 = vpop.f32.mrb[0].mxu0
  %v1481 = vadd.f32 %v1011, %v1480
  %v1482 = vpop.f32.mrb[0].mxu0
  %1483 = vmatprep.mubr.f32.mxu0 0.0
  %1484 = vmatmul.mubr.f32.gmra.mrb[0].mxu0 %v1141
  %v1485 = vpop.f32.mrb[0].mxu0
  %v1486 = vadd.f32 %v1011, %v1485
  %v1487 = vpop.f32.mrb[0].mxu0
  %1488 = vmatprep.mubr.f32.mxu0 0.0
  %1489 = vmatmul.mubr.f32.gmra.mrb[0].mxu0 %v1144
  %v1490 = vpop.f32.mrb[0].mxu0
  %v1491 = vadd.f32 %v1011, %v1490
  %v1492 = vpop.f32.mrb[0].mxu0
  %1493 = vmatprep.mubr.f32.mxu0 0.0
  %1494 = vmatmul.mubr.f32.gmra.mrb[0].mxu0 %v1147
  %v1495 = vpop.f32.mrb[0].mxu0
  %v1496 = vadd.f32 %v1011, %v1495
  %v1497 = vpop.f32.mrb[0].mxu0
  %1498 = vmatprep.mubr.f32.mxu0 0.0
  %1499 = vmatmul.mubr.f32.gmra.mrb[0].mxu0 %v1150
  %v1500 = vpop.f32.mrb[0].mxu0
  %v1501 = vadd.f32 %v1011, %v1500
  %v1502 = vpop.f32.mrb[0].mxu0
  %1503 = vmatprep.mubr.f32.mxu0 0.0
  %1504 = vmatmul.mubr.f32.gmra.mrb[0].mxu0 %v1153
  %v1505 = vpop.f32.mrb[0].mxu0
  %v1506 = vadd.f32 %v1011, %v1505
  %v1507 = vpop.f32.mrb[0].mxu0
  %1508 = vmatprep.mubr.f32.mxu0 0.0
  %1509 = vmatmul.mubr.f32.gmra.mrb[0].mxu0 %v1156
  %v1510 = vpop.f32.mrb[0].mxu0
  %v1511 = vadd.f32 %v1011, %v1510
  %v1512 = vpop.f32.mrb[0].mxu0
  %1513 = vmatprep.mubr.f32.mxu0 0.0
  %1514 = vmatmul.mubr.f32.gmra.mrb[0].mxu0 %v1159
  %v1515 = vpop.f32.mrb[0].mxu0
  %v1516 = vadd.f32 %v1011, %v1515
  %v1517 = vpop.f32.mrb[0].mxu0
  %1518 = vmatprep.mubr.f32.mxu0 0.0
  %1519 = vmatmul.mubr.f32.gmra.mrb[0].mxu0 %v1162
  %v1520 = vpop.f32.mrb[0].mxu0
  %v1521 = vadd.f32 %v1011, %v1520
  %v1522 = vpop.f32.mrb[0].mxu0
  %1523 = vmatprep.mubr.f32.mxu0 0.0
  %1524 = vmatmul.mubr.f32.gmra.mrb[0].mxu0 %v1165
  %v1525 = vpop.f32.mrb[0].mxu0
  %v1526 = vadd.f32 %v1011, %v1525
  %v1527 = vpop.f32.mrb[0].mxu0
  %1528 = vmatprep.mubr.f32.mxu0 0.0
  %1529 = vmatmul.mubr.f32.gmra.mrb[0].mxu0 %v1168
  %v1530 = vpop.f32.mrb[0].mxu0
  %v1531 = vadd.f32 %v1011, %v1530
  %v1532 = vpop.f32.mrb[0].mxu0
  %1533 = vmatprep.mubr.f32.mxu0 0.0
  %1534 = vmatmul.mubr.f32.gmra.mrb[0].mxu0 %v1171
  %v1535 = vpop.f32.mrb[0].mxu0
  %v1536 = vadd.f32 %v1011, %v1535
  %v1537 = vpop.f32.mrb[0].mxu0
  %1538 = vmatprep.mubr.f32.mxu0 0.0
  %1539 = vmatmul.mubr.f32.gmra.mrb[0].mxu0 %v1174
  %v1540 = vpop.f32.mrb[0].mxu0
  %v1541 = vadd.f32 %v1011, %v1540
  %v1542 = vpop.f32.mrb[0].mxu0
  %1543 = vmatprep.mubr.f32.mxu0 0.0
  %1544 = vmatmul.mubr.f32.gmra.mrb[0].mxu0 %v1177
  %v1545 = vpop.f32.mrb[0].mxu0
  %v1546 = vadd.f32 %v1011, %v1545
  %v1547 = vpop.f32.mrb[0].mxu0
  %1548 = vmatprep.mubr.f32.mxu0 0.0
  %1549 = vmatmul.mubr.f32.gmra.mrb[0].mxu0 %v1180
  %v1550 = vpop.f32.mrb[0].mxu0
  %v1551 = vadd.f32 %v1011, %v1550
  %v1552 = vpop.f32.mrb[0].mxu0
  %1553 = vmatprep.mubr.f32.mxu0 0.0
  %1554 = vmatmul.mubr.f32.gmra.mrb[0].mxu0 %v1183
  %v1555 = vpop.f32.mrb[0].mxu0
  %v1556 = vadd.f32 %v1011, %v1555
  %v1557 = vpop.f32.mrb[0].mxu0
  %1558 = vmatprep.mubr.f32.mxu0 0.0
  %1559 = vmatmul.mubr.f32.gmra.mrb[0].mxu0 %v1186
  %v1560 = vpop.f32.mrb[0].mxu0
  %v1561 = vadd.f32 %v1011, %v1560
  %v1562 = vpop.f32.mrb[0].mxu0
  %1563 = vmatprep.mubr.f32.mxu0 0.0
  %1564 = vmatmul.mubr.f32.gmra.mrb[0].mxu0 %v1189
  %v1565 = vpop.f32.mrb[0].mxu0
  %v1566 = vadd.f32 %v1011, %v1565
  %v1567 = vpop.f32.mrb[0].mxu0
  %1568 = vmatprep.mubr.f32.mxu0 0.0
  %1569 = vmatmul.mubr.f32.gmra.mrb[0].mxu0 %v1192
  %v1570 = vpop.f32.mrb[0].mxu0
  %v1571 = vadd.f32 %v1011, %v1570
  %v1572 = vpop.f32.mrb[0].mxu0
  %1573 = vmatprep.mubr.f32.mxu0 0.0
  %1574 = vmatmul.mubr.f32.gmra.mrb[0].mxu0 %v1195
  %v1575 = vpop.f32.mrb[0].mxu0
  %v1576 = vadd.f32 %v1011, %v1575
  %v1577 = vpop.f32.mrb[0].mxu0
  %1578 = vmatprep.mubr.f32.mxu0 0.0
  %1579 = vmatmul.mubr.f32.gmra.mrb[0].mxu0 %v1198
  %v1580 = vpop.f32.mrb[0].mxu0
  %v1581 = vadd.f32 %v1011, %v1580
  %v1582 = vpop.f32.mrb[0].mxu0
  %1583 = vmatprep.mubr.f32.mxu0 0.0
  %1584 = vmatmul.mubr.f32.gmra.mrb[0].mxu0 %v1201
  %v1585 = vpop.f32.mrb[0].mxu0
  %v1586 = vadd.f32 %v1011, %v1585
  %v1587 = vpop.f32.mrb[0].mxu0
  %1588 = vmatprep.mubr.f32.mxu0 0.0
  %1589 = vmatmul.mubr.f32.gmra.mrb[0].mxu0 %v1204
  %v1590 = vpop.f32.mrb[0].mxu0
  %v1591 = vadd.f32 %v1011, %v1590
  %v1592 = vpop.f32.mrb[0].mxu0
  %1593 = vdwg.mxu0
  %1594 = vst.msk [vmem:[%s5] sm:$0xff] %vm95, %v1276
  %1595 = vst.msk [vmem:[%s5 + $0x8] sm:$0xff] %vm95, %v1281
  %1596 = vst.msk [vmem:[%s5 + $0x10] sm:$0xff] %vm95, %v1286
  %1597 = vst.msk [vmem:[%s5 + $0x18] sm:$0xff] %vm95, %v1291
  %1598 = vst.msk [vmem:[%s5 + $0x20] sm:$0xff] %vm95, %v1296
  %1599 = vst.msk [vmem:[%s5 + $0x28] sm:$0xff] %vm95, %v1301
  %1600 = vst.msk [vmem:[%s5 + $0x30] sm:$0xff] %vm95, %v1306
  %1601 = vst.msk [vmem:[%s5 + $0x38] sm:$0xff] %vm95, %v1311
  %1602 = vst.msk [vmem:[%s5 + $0x40] sm:$0xff] %vm95, %v1316
  %1603 = vst.msk [vmem:[%s5 + $0x48] sm:$0xff] %vm95, %v1321
  %1604 = vst.msk [vmem:[%s5 + $0x50] sm:$0xff] %vm95, %v1326
  %1605 = vst.msk [vmem:[%s5 + $0x58] sm:$0xff] %vm95, %v1331
  %1606 = vst.msk [vmem:[%s5 + $0x60] sm:$0xff] %vm95, %v1336
  %1607 = vst.msk [vmem:[%s5 + $0x68] sm:$0xff] %vm95, %v1341
  %1608 = vst.msk [vmem:[%s5 + $0x70] sm:$0xff] %vm95, %v1346
  %1609 = vst.msk [vmem:[%s5 + $0x78] sm:$0xff] %vm95, %v1351
  %1610 = vst.msk [vmem:[%s5 + $0x80] sm:$0xff] %vm95, %v1356
  %1611 = vst.msk [vmem:[%s5 + $0x88] sm:$0xff] %vm95, %v1361
  %1612 = vst.msk [vmem:[%s5 + $0x90] sm:$0xff] %vm95, %v1366
  %1613 = vst.msk [vmem:[%s5 + $0x98] sm:$0xff] %vm95, %v1371
  %1614 = vst.msk [vmem:[%s5 + $0xa0] sm:$0xff] %vm95, %v1376
  %1615 = vst.msk [vmem:[%s5 + $0xa8] sm:$0xff] %vm95, %v1381
  %1616 = vst.msk [vmem:[%s5 + $0xb0] sm:$0xff] %vm95, %v1386
  %1617 = vst.msk [vmem:[%s5 + $0xb8] sm:$0xff] %vm95, %v1391
  %1618 = vst.msk [vmem:[%s5 + $0xc0] sm:$0xff] %vm95, %v1396
  %1619 = vst.msk [vmem:[%s5 + $0xc8] sm:$0xff] %vm95, %v1401
  %1620 = vst.msk [vmem:[%s5 + $0xd0] sm:$0xff] %vm95, %v1406
  %1621 = vst.msk [vmem:[%s5 + $0xd8] sm:$0xff] %vm95, %v1411
  %1622 = vst.msk [vmem:[%s5 + $0xe0] sm:$0xff] %vm95, %v1416
  %1623 = vst.msk [vmem:[%s5 + $0xe8] sm:$0xff] %vm95, %v1421
  %1624 = vst.msk [vmem:[%s5 + $0xf0] sm:$0xff] %vm95, %v1426
  %1625 = vst.msk [vmem:[%s5 + $0xf8] sm:$0xff] %vm95, %v1431
  %1626 = vst.msk [vmem:[%s5 + $0x100] sm:$0xff] %vm95, %v1436
  %1627 = vst.msk [vmem:[%s5 + $0x108] sm:$0xff] %vm95, %v1441
  %1628 = vst.msk [vmem:[%s5 + $0x110] sm:$0xff] %vm95, %v1446
  %1629 = vst.msk [vmem:[%s5 + $0x118] sm:$0xff] %vm95, %v1451
  %1630 = vst.msk [vmem:[%s5 + $0x120] sm:$0xff] %vm95, %v1456
  %1631 = vst.msk [vmem:[%s5 + $0x128] sm:$0xff] %vm95, %v1461
  %1632 = vst.msk [vmem:[%s5 + $0x130] sm:$0xff] %vm95, %v1466
  %1633 = vst.msk [vmem:[%s5 + $0x138] sm:$0xff] %vm95, %v1471
  %1634 = vst.msk [vmem:[%s5 + $0x140] sm:$0xff] %vm95, %v1476
  %1635 = vst.msk [vmem:[%s5 + $0x148] sm:$0xff] %vm95, %v1481
  %1636 = vst.msk [vmem:[%s5 + $0x150] sm:$0xff] %vm95, %v1486
  %1637 = vst.msk [vmem:[%s5 + $0x158] sm:$0xff] %vm95, %v1491
  %1638 = vst.msk [vmem:[%s5 + $0x160] sm:$0xff] %vm95, %v1496
  %1639 = vst.msk [vmem:[%s5 + $0x168] sm:$0xff] %vm95, %v1501
  %1640 = vst.msk [vmem:[%s5 + $0x170] sm:$0xff] %vm95, %v1506
  %1641 = vst.msk [vmem:[%s5 + $0x178] sm:$0xff] %vm95, %v1511
  %1642 = vst.msk [vmem:[%s5 + $0x180] sm:$0xff] %vm95, %v1516
  %1643 = vst.msk [vmem:[%s5 + $0x188] sm:$0xff] %vm95, %v1521
  %1644 = vst.msk [vmem:[%s5 + $0x190] sm:$0xff] %vm95, %v1526
  %1645 = vst.msk [vmem:[%s5 + $0x198] sm:$0xff] %vm95, %v1531
  %1646 = vst.msk [vmem:[%s5 + $0x1a0] sm:$0xff] %vm95, %v1536
  %1647 = vst.msk [vmem:[%s5 + $0x1a8] sm:$0xff] %vm95, %v1541
  %1648 = vst.msk [vmem:[%s5 + $0x1b0] sm:$0xff] %vm95, %v1546
  %1649 = vst.msk [vmem:[%s5 + $0x1b8] sm:$0xff] %vm95, %v1551
  %1650 = vst.msk [vmem:[%s5 + $0x1c0] sm:$0xff] %vm95, %v1556
  %1651 = vst.msk [vmem:[%s5 + $0x1c8] sm:$0xff] %vm95, %v1561
  %1652 = vst.msk [vmem:[%s5 + $0x1d0] sm:$0xff] %vm95, %v1566
  %1653 = vst.msk [vmem:[%s5 + $0x1d8] sm:$0xff] %vm95, %v1571
  %1654 = vst.msk [vmem:[%s5 + $0x1e0] sm:$0xff] %vm95, %v1576
  %1655 = vst.msk [vmem:[%s5 + $0x1e8] sm:$0xff] %vm95, %v1581
  %1656 = vst.msk [vmem:[%s5 + $0x1f0] sm:$0xff] %vm95, %v1586
  %1657 = vst.msk [vmem:[%s5 + $0x1f8] sm:$0xff] %vm95, %v1591
  // Predicated region
  $region22: #{mlp_pallas.1} parent=0 // pred_check
    _
  $region23: #{mlp_pallas.1} parent=0 // pred_check_branch
    %1659 = sbr.rel (0) target = $region25
  $region24: #{mlp_pallas.1} parent=0 // pred_region
    _
  $region25: #{mlp_pallas.1} parent=0 // pred_fallthru
    _
  // Predicated region
  $region26: #{mlp_pallas.1} parent=0 // pred_check
    _
  $region27: #{mlp_pallas.1} parent=0 // pred_check_branch
    %1661 = sbr.rel (0) target = $region29
  $region28: #{mlp_pallas.1} parent=0 // pred_region
    _
  $region29: #{mlp_pallas.1} parent=0 // pred_fallthru
    _

</llo_original>
